<compile_context>
chip_gen: v5e
topology: v5e:2x2
jax: 0.10.0
libtpu: 0.0.40
codegen_flags: <defaults>
</compile_context>

<pallas_src>
import jax
import jax.numpy as jnp
from jax.experimental import pallas as pl
from jax.experimental.pallas import tpu as pltpu

IGNORE_ID = -100.0


def _loss_kernel(p0_ref, p1_ref, gold_ref, sum_ref, cnt_ref):
    """grid = (P partitions [parallel], tiles along L [arbitrary/reduction])."""
    i = pl.program_id(1)

    @pl.when(i == 0)
    def _init():
        sum_ref[...] = jnp.zeros_like(sum_ref)
        cnt_ref[...] = jnp.zeros_like(cnt_ref)

    p0 = p0_ref[...].astype(jnp.float32)      # class-0 logits (B, TL)
    p1 = p1_ref[...].astype(jnp.float32)      # class-1 logits (B, TL)
    gold = gold_ref[...].astype(jnp.float32)  # soft labels / -100 (B, TL)

    mask = gold != IGNORE_ID
    g = jnp.where(mask, gold, 0.0)            # gold_copy[gold == -100] = 0

    # 2-class CE:  -( (1-g)*logp0 + g*logp1 ) == softplus(d) - g*d,  d = p1-p0
    d = p1 - p0
    sp = jnp.maximum(d, 0.0) + jnp.log1p(jnp.exp(-jnp.abs(d)))  # stable softplus
    loss = jnp.where(mask, sp - g * d, 0.0)

    # Elementwise vector accumulation (no cross-lane reduce in the hot loop).
    sum_ref[...] += loss
    cnt_ref[...] += mask.astype(jnp.float32)


def smooth_loss(pred, gold, *, tile_l=1024, num_partitions=2):
    """pred: (B, 2, L) float/bf16 logits; gold: (B, L) float soft labels with -100."""
    B, C, L = pred.shape
    assert C == 2, "module semantics require n_class == 2"

    # Tile size along L: multiple of 128, no larger than the (rounded) sequence.
    l_rounded = -(-L // 128) * 128
    tl = max(128, min((tile_l // 128) * 128, l_rounded))
    num_tiles = -(-L // tl)
    P = num_partitions if num_tiles >= num_partitions else 1
    tiles_per_part = -(-num_tiles // P)
    L_pad = tl * tiles_per_part * P

    # Pad instead of falling back to one giant tile; padded gold is ignored.
    if L_pad != L:
        pred = jnp.pad(pred, ((0, 0), (0, 0), (0, L_pad - L)))
        gold = jnp.pad(gold, ((0, 0), (0, L_pad - L)), constant_values=IGNORE_ID)

    # Free row-major view: row b = [class-0 values (L_pad) | class-1 values (L_pad)].
    pred2d = pred.reshape(B, C * L_pad)
    n_blk = L_pad // tl

    sum_out, cnt_out = pl.pallas_call(
        _loss_kernel,
        out_shape=(
            jax.ShapeDtypeStruct((P, B, tl), jnp.float32),  # per-partition loss sums
            jax.ShapeDtypeStruct((P, B, tl), jnp.float32),  # per-partition counts
        ),
        grid_spec=pltpu.PrefetchScalarGridSpec(
            num_scalar_prefetch=0,
            grid=(P, tiles_per_part),
            in_specs=[
                # class-0 plane of pred2d
                pl.BlockSpec((B, tl), lambda p, i: (0, p * tiles_per_part + i)),
                # class-1 plane of pred2d (offset by n_blk blocks)
                pl.BlockSpec((B, tl), lambda p, i: (0, n_blk + p * tiles_per_part + i)),
                # gold
                pl.BlockSpec((B, tl), lambda p, i: (0, p * tiles_per_part + i)),
            ],
            out_specs=[
                pl.BlockSpec((None, B, tl), lambda p, i: (p, 0, 0)),
                pl.BlockSpec((None, B, tl), lambda p, i: (p, 0, 0)),
            ],
        ),
        compiler_params=pltpu.CompilerParams(
            dimension_semantics=("parallel", "arbitrary")),
    )(pred2d, pred2d, gold)

    # Tiny final reduction + divide (cheap, done by XLA).
    # TODO(synk): if every position is ignored this is 0/0 -> NaN, matching the
    # reference (the PyTorch module asserts non_pad_mask.sum() > 0 instead).
    return jnp.sum(sum_out) / jnp.sum(cnt_out)


def ref_loss(pred, gold):
    """Pure-JAX reference mirroring the PyTorch module."""
    mask = gold != IGNORE_ID
    g = jnp.where(mask, gold, 0.0)
    logp = jax.nn.log_softmax(pred.astype(jnp.float32), axis=1)
    loss = -((1.0 - g) * logp[:, 0, :] + g * logp[:, 1, :])
    return jnp.sum(jnp.where(mask, loss, 0.0)) / jnp.sum(mask)


if __name__ == "__main__":
    key = jax.random.PRNGKey(0)
    k_pred, k_gold, k_pad = jax.random.split(key, 3)

    B, C, L = 2, 2, 384  # small, L not a power-of-two multiple of the sweep tile
    pred = jax.random.normal(k_pred, (B, C, L), dtype=jnp.float32)
    labels = jax.random.bernoulli(k_gold, 0.5, (B, L)).astype(jnp.float32)
    pad = jax.random.bernoulli(k_pad, 0.25, (B, L))      # ~25% ignored positions
    gold = jnp.where(pad, IGNORE_ID, labels).astype(jnp.float32)

    expected = jax.block_until_ready(ref_loss(pred, gold))

    # Default config (single partition, one big tile).
    out_default = jax.block_until_ready(smooth_loss(pred, gold))
    assert jnp.allclose(out_default, expected, rtol=1e-5, atol=1e-5), (
        out_default, expected)

    # Multi-tile + padded-L + 2-partition (megacore) path.
    out_tiled = jax.block_until_ready(
        smooth_loss(pred, gold, tile_l=128, num_partitions=2))
    assert jnp.allclose(out_tiled, expected, rtol=1e-5, atol=1e-5), (
        out_tiled, expected)

    print("KERNEL_OK")
</pallas_src>

<mosaic_0001>
module attributes {stable_mosaic.version = 11 : i64} {
  func.func @_loss_kernel(%arg0: i32, %arg1: i32, %arg2: memref<2x384xf32, #tpu.memory_space<vmem>>, %arg3: memref<2x384xf32, #tpu.memory_space<vmem>>, %arg4: memref<2x384xf32, #tpu.memory_space<vmem>>, %arg5: memref<1x2x384xf32, #tpu.memory_space<vmem>>, %arg6: memref<1x2x384xf32, #tpu.memory_space<vmem>>) attributes {dimension_semantics = [#tpu.dimension_semantics<parallel>, #tpu.dimension_semantics<arbitrary>], iteration_bounds = array<i64: 1, 1>, scalar_prefetch = 0 : i64, scratch_operands = 0 : i64, tpu.core_type = #tpu.core_type<tc>, window_params = [{transform_indices = @transform_0, window_bounds = array<i64: 2, 384>}, {transform_indices = @transform_1, window_bounds = array<i64: 2, 384>}, {transform_indices = @transform_2, window_bounds = array<i64: 2, 384>}, {transform_indices = @transform_3, window_bounds = array<i64: 1, 2, 384>}, {transform_indices = @transform_4, window_bounds = array<i64: 1, 2, 384>}]} {
    %c0_i32 = arith.constant 0 : i32
    %0 = arith.cmpi eq, %arg1, %c0_i32 : i32
    %1 = arith.extui %0 : i1 to i32
    %c0_i32_0 = arith.constant 0 : i32
    %2 = arith.cmpi ne, %1, %c0_i32_0 : i32
    scf.if %2 {
      %cst_22 = arith.constant 0.000000e+00 : f32
      %37 = vector.broadcast %cst_22 : f32 to vector<2x384xf32>
      %c0_23 = arith.constant 0 : index
      %c0_24 = arith.constant 0 : index
      %c0_25 = arith.constant 0 : index
      %38 = vector.load %arg5[%c0_23, %c0_24, %c0_25] : memref<1x2x384xf32, #tpu.memory_space<vmem>>, vector<1x2x384xf32>
      %39 = vector.shape_cast %38 : vector<1x2x384xf32> to vector<2x384xf32>
      %40 = vector.shape_cast %37 : vector<2x384xf32> to vector<1x2x384xf32>
      tpu.vector_store %arg5[%c0_23, %c0_24, %c0_25], %40 {strides = array<i32>} : memref<1x2x384xf32, #tpu.memory_space<vmem>>, vector<1x2x384xf32>,
      %cst_26 = arith.constant 0.000000e+00 : f32
      %41 = vector.broadcast %cst_26 : f32 to vector<2x384xf32>
      %c0_27 = arith.constant 0 : index
      %c0_28 = arith.constant 0 : index
      %c0_29 = arith.constant 0 : index
      %42 = vector.load %arg6[%c0_27, %c0_28, %c0_29] : memref<1x2x384xf32, #tpu.memory_space<vmem>>, vector<1x2x384xf32>
      %43 = vector.shape_cast %42 : vector<1x2x384xf32> to vector<2x384xf32>
      %44 = vector.shape_cast %41 : vector<2x384xf32> to vector<1x2x384xf32>
      tpu.vector_store %arg6[%c0_27, %c0_28, %c0_29], %44 {strides = array<i32>} : memref<1x2x384xf32, #tpu.memory_space<vmem>>, vector<1x2x384xf32>,
    } else {
    }
    %c0 = arith.constant 0 : index
    %c0_1 = arith.constant 0 : index
    %3 = vector.load %arg2[%c0, %c0_1] : memref<2x384xf32, #tpu.memory_space<vmem>>, vector<2x384xf32>
    %c0_2 = arith.constant 0 : index
    %c0_3 = arith.constant 0 : index
    %4 = vector.load %arg3[%c0_2, %c0_3] : memref<2x384xf32, #tpu.memory_space<vmem>>, vector<2x384xf32>
    %c0_4 = arith.constant 0 : index
    %c0_5 = arith.constant 0 : index
    %5 = vector.load %arg4[%c0_4, %c0_5] : memref<2x384xf32, #tpu.memory_space<vmem>>, vector<2x384xf32>
    %cst = arith.constant -1.000000e+02 : f32
    %6 = vector.broadcast %cst : f32 to vector<2x384xf32>
    %7 = arith.cmpf one, %5, %6 : vector<2x384xf32>
    %cst_6 = arith.constant 0.000000e+00 : f32
    %8 = vector.broadcast %cst_6 : f32 to vector<2x384xf32>
    %9 = arith.select %7, %5, %8 : vector<2x384xi1>, vector<2x384xf32>
    %10 = arith.subf %4, %3 : vector<2x384xf32>
    %cst_7 = arith.constant 0.000000e+00 : f32
    %11 = vector.broadcast %cst_7 : f32 to vector<2x384xf32>
    %12 = arith.maximumf %10, %11 : vector<2x384xf32>
    %13 = math.absf %10 : vector<2x384xf32>
    %cst_8 = arith.constant 0.000000e+00 : f32
    %14 = vector.broadcast %cst_8 : f32 to vector<2x384xf32>
    %15 = arith.subf %14, %13 : vector<2x384xf32>
    %16 = math.exp %15 : vector<2x384xf32>
    %17 = math.log1p %16 : vector<2x384xf32>
    %18 = arith.addf %12, %17 : vector<2x384xf32>
    %19 = arith.mulf %9, %10 : vector<2x384xf32>
    %20 = arith.subf %18, %19 : vector<2x384xf32>
    %cst_9 = arith.constant 0.000000e+00 : f32
    %21 = vector.broadcast %cst_9 : f32 to vector<2x384xf32>
    %22 = arith.select %7, %20, %21 : vector<2x384xi1>, vector<2x384xf32>
    %c0_10 = arith.constant 0 : index
    %c0_11 = arith.constant 0 : index
    %c0_12 = arith.constant 0 : index
    %23 = vector.load %arg5[%c0_10, %c0_11, %c0_12] : memref<1x2x384xf32, #tpu.memory_space<vmem>>, vector<1x2x384xf32>
    %24 = vector.shape_cast %23 : vector<1x2x384xf32> to vector<2x384xf32>
    %25 = arith.addf %24, %22 : vector<2x384xf32>
    %c0_13 = arith.constant 0 : index
    %c0_14 = arith.constant 0 : index
    %c0_15 = arith.constant 0 : index
    %26 = vector.load %arg5[%c0_13, %c0_14, %c0_15] : memref<1x2x384xf32, #tpu.memory_space<vmem>>, vector<1x2x384xf32>
    %27 = vector.shape_cast %26 : vector<1x2x384xf32> to vector<2x384xf32>
    %28 = vector.shape_cast %25 : vector<2x384xf32> to vector<1x2x384xf32>
    tpu.vector_store %arg5[%c0_13, %c0_14, %c0_15], %28 {strides = array<i32>} : memref<1x2x384xf32, #tpu.memory_space<vmem>>, vector<1x2x384xf32>,
    %c0_16 = arith.constant 0 : index
    %c0_17 = arith.constant 0 : index
    %c0_18 = arith.constant 0 : index
    %29 = vector.load %arg6[%c0_16, %c0_17, %c0_18] : memref<1x2x384xf32, #tpu.memory_space<vmem>>, vector<1x2x384xf32>
    %30 = vector.shape_cast %29 : vector<1x2x384xf32> to vector<2x384xf32>
    %31 = arith.extui %7 : vector<2x384xi1> to vector<2x384xi32>
    %32 = arith.sitofp %31 : vector<2x384xi32> to vector<2x384xf32>
    %33 = arith.addf %30, %32 : vector<2x384xf32>
    %c0_19 = arith.constant 0 : index
    %c0_20 = arith.constant 0 : index
    %c0_21 = arith.constant 0 : index
    %34 = vector.load %arg6[%c0_19, %c0_20, %c0_21] : memref<1x2x384xf32, #tpu.memory_space<vmem>>, vector<1x2x384xf32>
    %35 = vector.shape_cast %34 : vector<1x2x384xf32> to vector<2x384xf32>
    %36 = vector.shape_cast %33 : vector<2x384xf32> to vector<1x2x384xf32>
    tpu.vector_store %arg6[%c0_19, %c0_20, %c0_21], %36 {strides = array<i32>} : memref<1x2x384xf32, #tpu.memory_space<vmem>>, vector<1x2x384xf32>,
    return
  }
  func.func @transform_0(%arg0: i32, %arg1: i32) -> (i32, i32) {
    %c1_i32 = arith.constant 1 : i32
    %0 = arith.muli %arg0, %c1_i32 : i32
    %1 = arith.addi %0, %arg1 : i32
    %c0_i32 = arith.constant 0 : i32
    %c0_i32_0 = arith.constant 0 : i32
    return %c0_i32, %1 : i32, i32
  }
  func.func @transform_1(%arg0: i32, %arg1: i32) -> (i32, i32) {
    %c1_i32 = arith.constant 1 : i32
    %0 = arith.muli %arg0, %c1_i32 : i32
    %c1_i32_0 = arith.constant 1 : i32
    %1 = arith.addi %c1_i32_0, %0 : i32
    %2 = arith.addi %1, %arg1 : i32
    %c0_i32 = arith.constant 0 : i32
    %c0_i32_1 = arith.constant 0 : i32
    return %c0_i32, %2 : i32, i32
  }
  func.func @transform_2(%arg0: i32, %arg1: i32) -> (i32, i32) {
    %c1_i32 = arith.constant 1 : i32
    %0 = arith.muli %arg0, %c1_i32 : i32
    %1 = arith.addi %0, %arg1 : i32
    %c0_i32 = arith.constant 0 : i32
    %c0_i32_0 = arith.constant 0 : i32
    return %c0_i32, %1 : i32, i32
  }
  func.func @transform_3(%arg0: i32, %arg1: i32) -> (i32, i32, i32) {
    %c0_i32 = arith.constant 0 : i32
    %c0_i32_0 = arith.constant 0 : i32
    %c0_i32_1 = arith.constant 0 : i32
    return %arg0, %c0_i32, %c0_i32_0 : i32, i32, i32
  }
  func.func @transform_4(%arg0: i32, %arg1: i32) -> (i32, i32, i32) {
    %c0_i32 = arith.constant 0 : i32
    %c0_i32_0 = arith.constant 0 : i32
    %c0_i32_1 = arith.constant 0 : i32
    return %arg0, %c0_i32, %c0_i32_0 : i32, i32, i32
  }
}

</mosaic_0001>

<llo_original>
// kernel: tpu_custom_call.1
$region0: #{tpu_custom_call.1}
  #allocation0 [shape = 'u32[]', space=smem, size = 0x4, offset = 0x4, fixed_abs, tag = 'smem constant byte address 0x4 - core index']
  #allocation1 [shape = 'u32[72,128]{1,0:T(1,128)}', space=vmem, size = 0x9000, scoped, tag = 'internal scratch']
  %s0 = inlined_call_operand.hbm [shape: f32[2,768], index: 0, kind: input, shape index: {}]
  %s1 = inlined_call_operand.hbm [shape: f32[2,768], index: 1, kind: input, shape index: {}]
  %s2 = inlined_call_operand.hbm [shape: f32[2,384], index: 2, kind: input, shape index: {}]
  %s3 = inlined_call_operand.hbm [shape: f32[1,2,384], index: 3, kind: output, shape index: {0}]
  %s4 = inlined_call_operand.hbm [shape: f32[1,2,384], index: 4, kind: output, shape index: {1}]
  %5 = xla_tuple %s3, %s4
  %s6 = sld [smem:[#allocation0]]
  $region46: #{tpu_custom_call.1} parent=0
    _
  %s8 = ssub.s32 1, %s6
  %s9 = scalar_select 0, %s8, %s6
  $region1: #{tpu_custom_call.1} parent=0
    #allocation2 [shape = 'u8[3072]{0}', space=vmem, size = 0xc00, scoped, tag = 'input window, operand 0, single buffered']
    #allocation3 [shape = 's32[1]{0}', space=sflag, size = 0x4, scoped, tag = 'scoped memory for tpu_custom_call.1']
    #allocation4 [shape = 's32[1]{0}', space=sflag, size = 0x4, scoped, tag = 'scoped memory for tpu_custom_call.1']
    #allocation5 [shape = 'u8[3072]{0}', space=vmem, size = 0xc00, scoped, tag = 'input window, operand 1, single buffered']
    #allocation6 [shape = 's32[1]{0}', space=sflag, size = 0x4, scoped, tag = 'scoped memory for tpu_custom_call.1']
    #allocation7 [shape = 'u8[3072]{0}', space=vmem, size = 0xc00, scoped, tag = 'input window, operand 2, single buffered']
    #allocation8 [shape = 'u8[3072]{0}', space=vmem, size = 0xc00, scoped, tag = 'output window, operand 0, single buffered']
    #allocation9 [shape = 'u8[3072]{0}', space=vmem, size = 0xc00, scoped, tag = 'output window, operand 1, single buffered']
    #allocation10 [shape = 's32[1]{0}', space=sflag, size = 0x4, scoped, tag = 'scoped memory for tpu_custom_call.1']
    %10 = vsyncpa [#allocation3], 0
    %11 = vsyncpa [#allocation6], 0
    %12 = vsyncpa [#allocation4], 0
    %13 = vsyncpa [#allocation10], 0
    // Predicated region
    $region2: #{tpu_custom_call.1} parent=1 // pred_check
      _
    $region3: #{tpu_custom_call.1} parent=1 // pred_check_branch
      %15 = sbr.rel (0) target = $region5
    $region4: #{tpu_custom_call.1} parent=1 // pred_region
      %s16 = sadd.s32 0, 0
      %s17 = smul.u32 3, %s16
      %19 = vsyncadd [#allocation3], 0
      %s20 = smul.addr %s17, 2
      %s21 = scalar_lea.hbm %s0, %s20
      %s23 = sshll.u32 %s21, 4
      %s24 = int_to_ptr.hbm [resolvable:$true] %s23
      %s25 = sshll.u32 [#allocation2], 4
      %s26 = int_to_ptr.vmem [resolvable:$true] %s25
      %28 = dma.hbm_to_vmem [thread:$0]  %s24, 96, %s26, [#allocation3]
    $region5: #{tpu_custom_call.1} parent=1 // pred_fallthru
      _
    // Predicated region
    $region6: #{tpu_custom_call.1} parent=1 // pred_check
      _
    $region7: #{tpu_custom_call.1} parent=1 // pred_check_branch
      %30 = sbr.rel (0) target = $region9
    $region8: #{tpu_custom_call.1} parent=1 // pred_region
      %s31 = sadd.s32 0, 1
      %s32 = sadd.s32 %s31, 0
      %s33 = smul.u32 3, %s32
      %35 = vsyncadd [#allocation6], 0
      %s36 = smul.addr %s33, 2
      %s37 = scalar_lea.hbm %s1, %s36
      %s39 = sshll.u32 %s37, 4
      %s40 = int_to_ptr.hbm [resolvable:$true] %s39
      %s41 = sshll.u32 [#allocation5], 4
      %s42 = int_to_ptr.vmem [resolvable:$true] %s41
      %44 = dma.hbm_to_vmem [thread:$0]  %s40, 96, %s42, [#allocation6]
    $region9: #{tpu_custom_call.1} parent=1 // pred_fallthru
      _
    // Predicated region
    $region10: #{tpu_custom_call.1} parent=1 // pred_check
      _
    $region11: #{tpu_custom_call.1} parent=1 // pred_check_branch
      %46 = sbr.rel (0) target = $region13
    $region12: #{tpu_custom_call.1} parent=1 // pred_region
      %s47 = sadd.s32 0, 0
      %s48 = smul.u32 3, %s47
      %50 = vsyncadd [#allocation6], 0
      %s51 = smul.addr %s48, 2
      %s52 = scalar_lea.hbm %s2, %s51
      %s54 = sshll.u32 %s52, 4
      %s55 = int_to_ptr.hbm [resolvable:$true] %s54
      %s56 = sshll.u32 [#allocation7], 4
      %s57 = int_to_ptr.vmem [resolvable:$true] %s56
      %59 = dma.hbm_to_vmem [thread:$0]  %s55, 96, %s57, [#allocation6]
    $region13: #{tpu_custom_call.1} parent=1 // pred_fallthru
      _
    // Predicated region
    $region14: #{tpu_custom_call.1} parent=1 // pred_check
      _
    $region15: #{tpu_custom_call.1} parent=1 // pred_check_branch
      %61 = sbr.rel (0) target = $region17
    $region16: #{tpu_custom_call.1} parent=1 // pred_region
      %63 = dma.done [#allocation3], 96
    $region17: #{tpu_custom_call.1} parent=1 // pred_fallthru
      _
    // Predicated region
    $region18: #{tpu_custom_call.1} parent=1 // pred_check
      _
    $region19: #{tpu_custom_call.1} parent=1 // pred_check_branch
      %65 = sbr.rel (0) target = $region21
    $region20: #{tpu_custom_call.1} parent=1 // pred_region
      %67 = dma.done [#allocation6], 96
    $region21: #{tpu_custom_call.1} parent=1 // pred_fallthru
      _
    // Predicated region
    $region22: #{tpu_custom_call.1} parent=1 // pred_check
      _
    $region23: #{tpu_custom_call.1} parent=1 // pred_check_branch
      %69 = sbr.rel (0) target = $region25
    $region24: #{tpu_custom_call.1} parent=1 // pred_region
      %71 = dma.done [#allocation6], 96
    $region25: #{tpu_custom_call.1} parent=1 // pred_fallthru
      _
    %s72 = sadd.s32 0, 0
    %s73 = smul.u32 3, %s72
    %s74 = sadd.s32 0, 1
    %s75 = sadd.s32 %s74, 0
    %s76 = smul.u32 3, %s75
    %s77 = sadd.s32 0, 0
    %s78 = smul.u32 3, %s77
    %p79 = scmp.eq.s32.totalorder 0, 0
    // Predicated region
    $region26: #{tpu_custom_call.1} parent=1 // pred_check
      %p80 = pneg %p79
    $region27: #{tpu_custom_call.1} parent=1 // pred_check_branch
      %82 = sbr.rel (%p80) target = $region29
    $region28: #{tpu_custom_call.1} parent=1 // pred_region
      %83 = vst [vmem:[#allocation8] sm:$0x3f] 0.0
      %84 = vst [vmem:[#allocation9] sm:$0x3f] 0.0
    $region29: #{tpu_custom_call.1} parent=1 // pred_fallthru
      _
    %v85 = vld [vmem:[#allocation2] sm:$0x3f]
    %v86 = vld [vmem:[#allocation5] sm:$0x3f]
    %v87 = vld [vmem:[#allocation7] sm:$0x3f]
    %vm88 = vcmp.ne.f32.partialorder %v87, -100.0
    %v89 = vsel %vm88, %v87, 0.0
    %v90 = vsub.f32 %v86, %v85
    %v91 = vmax.f32 %v90, 0.0
    %v92 = vand.u32 2147483647, %v90
    %v93 = vsub.f32 0.0, %v92
    %v94 = vmul.f32 %v93, 1.442695
    %v95 = vpow.pop %v94
    %v96 = vadd.f32 %v95, 1.0
    %v97 = vlog2.pop %v96
    %v98 = vmul.f32 %v97, 0.6931472
    %v99 = vmul.f32 -0.5, %v95
    %v100 = vadd.f32 %v99, 1.0
    %v101 = vmul.f32 %v100, %v95
    %v102 = vand.u32 2147483647, %v95
    %vm103 = vcmp.lt.f32.partialorder %v102, 0.0004427343
    %v104 = vsel %vm103, %v101, %v98
    %v105 = vadd.f32 %v91, %v104
    %v106 = vmul.f32 %v89, %v90
    %v107 = vsub.f32 %v105, %v106
    %v108 = vsel %vm88, %v107, 0.0
    %v109 = vld [vmem:[#allocation8] sm:$0x3f]
    %v110 = vadd.f32 %v109, %v108
    %111 = vst [vmem:[#allocation8] sm:$0x3f] %v110
    %v112 = vld [vmem:[#allocation9] sm:$0x3f]
    %v113 = vsel %vm88, 1, 0
    %v114 = vcvt.s32.f32 %v113
    %v115 = vadd.f32 %v112, %v114
    %116 = vst [vmem:[#allocation9] sm:$0x3f] %v115
    // Predicated region
    $region30: #{tpu_custom_call.1} parent=1 // pred_check
      _
    $region31: #{tpu_custom_call.1} parent=1 // pred_check_branch
      %118 = sbr.rel (0) target = $region33
    $region32: #{tpu_custom_call.1} parent=1 // pred_region
      %120 = vsyncadd [#allocation4], 0
      %s122 = sshll.u32 [#allocation8], 4
      %s123 = int_to_ptr.vmem [resolvable:$true] %s122
      %s124 = sshll.u32 %s3, 4
      %s125 = int_to_ptr.hbm [resolvable:$true] %s124
      %127 = dma.vmem_to_hbm [thread:$0]  %s123, 96, %s125, [#allocation4]
    $region33: #{tpu_custom_call.1} parent=1 // pred_fallthru
      _
    // Predicated region
    $region34: #{tpu_custom_call.1} parent=1 // pred_check
      _
    $region35: #{tpu_custom_call.1} parent=1 // pred_check_branch
      %129 = sbr.rel (0) target = $region37
    $region36: #{tpu_custom_call.1} parent=1 // pred_region
      %131 = vsyncadd [#allocation10], 0
      %s133 = sshll.u32 [#allocation9], 4
      %s134 = int_to_ptr.vmem [resolvable:$true] %s133
      %s135 = sshll.u32 %s4, 4
      %s136 = int_to_ptr.hbm [resolvable:$true] %s135
      %138 = dma.vmem_to_hbm [thread:$0]  %s134, 96, %s136, [#allocation10]
    $region37: #{tpu_custom_call.1} parent=1 // pred_fallthru
      _
    // Predicated region
    $region38: #{tpu_custom_call.1} parent=1 // pred_check
      _
    $region39: #{tpu_custom_call.1} parent=1 // pred_check_branch
      %140 = sbr.rel (0) target = $region41
    $region40: #{tpu_custom_call.1} parent=1 // pred_region
      %142 = dma.done [#allocation4], 96
    $region41: #{tpu_custom_call.1} parent=1 // pred_fallthru
      _
    // Predicated region
    $region42: #{tpu_custom_call.1} parent=1 // pred_check
      _
    $region43: #{tpu_custom_call.1} parent=1 // pred_check_branch
      %144 = sbr.rel (0) target = $region45
    $region44: #{tpu_custom_call.1} parent=1 // pred_region
      %146 = dma.done [#allocation10], 96
    $region45: #{tpu_custom_call.1} parent=1 // pred_fallthru
      _
    %147 = vsyncpa [#allocation3], 1
    %148 = vsyncpa [#allocation6], 1
    %149 = vsyncpa [#allocation4], 1
    %150 = vsyncpa [#allocation10], 1

</llo_original>
